<compile_context>
chip_gen: v7x
topology: tpu7x:2x2x1
jax: 0.10.0
libtpu: 0.0.40
codegen_flags: <defaults>
</compile_context>

<pallas_src>
import functools

import jax
import jax.numpy as jnp
import numpy as np
from jax import lax
from jax.experimental import pallas as pl
from jax.experimental.pallas import tpu as pltpu


def drrnn_kernel(xa_ref, w0a_ref, wb_ref, bb_ref, wo_ref, o_ref, *, depth, lc):
    """One grid step: produce a (out_N, tb) lane-dense output tile.

    xa_ref : (in_N+1, tb) f32   input^T with a ones row appended (b0 fold)
    w0a_ref: (m, in_N+1)  bf16  [W0 ; b0]^T
    wb_ref : (2*depth, m, m) bf16  interleaved [W1[d]^T, W2[d]^T]
    bb_ref : (2*depth, m, 1) f32   interleaved [b1[d]^T, b2[d]^T]
    wo_ref : (out_N, m+1) f32   [Wout^T | bout]
    o_ref  : (out_N, tb)  f32
    """
    m = w0a_ref.shape[0]
    tb = xa_ref.shape[-1]
    nc = tb // lc                                   # static chunk count

    # Resident (tiny) weights, loaded once per tile.
    w0a = w0a_ref[...]                              # (m, in_N+1) bf16
    woutt = wo_ref[:, 0:m].astype(jnp.bfloat16)     # (out_N, m)
    bout = wo_ref[:, m:m + 1]                       # (out_N, 1) f32

    def chunk_body(c, carry):
        s = pl.multiple_of(c * lc, lc)              # aligned lane-chunk start
        xa = xa_ref[:, pl.ds(s, lc)]                # (in_N+1, lc) f32

        # boundary-condition factors (rows of the transposed input), each (1, lc)
        dx = xa[0:1, :]
        dy = xa[1:2, :]
        dz = xa[2:3, :]
        mask = dx * dy * dz * (1.0 - dx) * (1.0 - dy) * (1.0 - dz)

        # first Linear (bias folded into the ones row of xa): h = [W0;b0]^T @ [x;1]^T
        h = jnp.dot(w0a, xa.astype(jnp.bfloat16),
                    preferred_element_type=jnp.float32)        # (m, lc) f32

        # residual Blocks: h <- tanh(W2^T tanh(W1^T h + b1) + b2) + h
        # depth is small & static -> unrolled inside the chunk (full scheduler
        # visibility); live set stays bounded by the lane-chunk width.
        for d in range(depth):
            t = jnp.tanh(
                jnp.dot(wb_ref[2 * d], h.astype(jnp.bfloat16),
                        preferred_element_type=jnp.float32) + bb_ref[2 * d])
            t = jnp.tanh(
                jnp.dot(wb_ref[2 * d + 1], t.astype(jnp.bfloat16),
                        preferred_element_type=jnp.float32) + bb_ref[2 * d + 1])
            h = t + h

        # output Linear + hard boundary mask; lane-dense (out_N, lc) store
        out = (jnp.dot(woutt, h.astype(jnp.bfloat16),
                       preferred_element_type=jnp.float32) + bout)
        o_ref[:, pl.ds(s, lc)] = out * mask
        return carry

    lax.fori_loop(0, nc, chunk_body, 0)


def drrnn_forward(x, params, *, depth, tb=512, lc=256):
    """x: (B, in_N=3) f32, B % tb == 0 (pad with zero rows if needed: padded
    rows output exactly 0 through the boundary mask). params: see init_params.

    Choose tb so B // tb is an even number >= 4 (keeps both v7x TensorCores
    busy and pipelined); for very large B raise tb (VMEM is not the limit —
    resident weights are ~20 KB and tile traffic is ~(in_N+2)*tb*4 bytes) while
    lc keeps the live vreg footprint fixed.
    """
    B, in_N = x.shape
    m = params["w0"].shape[1]
    out_N = params["wout"].shape[1]
    assert B % tb == 0, "pad B to a multiple of tb (zero rows -> zero output via mask)"
    assert tb % lc == 0 and lc % 128 == 0, "lane chunk must be a multiple of 128"

    # ---- wrapper-side operand packing (tiny, constant-foldable) ----
    # TODO(synk): for very large B, have the collocation-point producer emit the
    # (in_N+1, B) batch-on-lanes layout directly instead of transposing here.
    xt = jnp.transpose(x)                                        # (in_N, B)
    xa = jnp.concatenate([xt, jnp.ones((1, B), jnp.float32)], axis=0)  # (in_N+1, B)

    w0a_t = jnp.transpose(
        jnp.concatenate([params["w0"], params["b0"]], axis=0)
    ).astype(jnp.bfloat16)                                       # (m, in_N+1)

    w1t = jnp.swapaxes(params["w1s"], 1, 2)                      # (depth, m, m) = W1^T
    w2t = jnp.swapaxes(params["w2s"], 1, 2)
    wb = jnp.stack([w1t, w2t], axis=1).reshape(2 * depth, m, m).astype(jnp.bfloat16)

    b1t = jnp.swapaxes(params["b1s"], 1, 2)                      # (depth, m, 1)
    b2t = jnp.swapaxes(params["b2s"], 1, 2)
    bb = jnp.stack([b1t, b2t], axis=1).reshape(2 * depth, m, 1)  # f32

    wo = jnp.concatenate([jnp.transpose(params["wout"]),         # (out_N, m)
                          jnp.transpose(params["bout"])], axis=1)  # (out_N, m+1)

    kernel = functools.partial(drrnn_kernel, depth=depth, lc=lc)

    grid_spec = pltpu.PrefetchScalarGridSpec(
        num_scalar_prefetch=0,
        grid=(B // tb,),
        in_specs=[
            pl.BlockSpec((in_N + 1, tb), lambda i: (0, i)),            # [x;1]^T tile
            pl.BlockSpec((m, in_N + 1), lambda i: (0, 0)),             # [W0;b0]^T
            pl.BlockSpec((2 * depth, m, m), lambda i: (0, 0, 0)),      # block weights
            pl.BlockSpec((2 * depth, m, 1), lambda i: (0, 0, 0)),      # block biases
            pl.BlockSpec((out_N, m + 1), lambda i: (0, 0)),            # [Wout^T|bout]
        ],
        out_specs=pl.BlockSpec((out_N, tb), lambda i: (0, i)),         # lane-dense out
    )

    weight_bytes = (w0a_t.size * 2 + wb.size * 2 + bb.size * 4 + wo.size * 4)
    cost = pl.CostEstimate(
        flops=2 * B * ((in_N + 1) * m + 2 * depth * m * m + m * out_N),
        transcendentals=2 * depth * B * m,
        bytes_accessed=4 * B * (in_N + 1) + 4 * B * out_N + weight_bytes,
    )

    out_t = pl.pallas_call(
        kernel,
        out_shape=jax.ShapeDtypeStruct((out_N, B), jnp.float32),
        grid_spec=grid_spec,
        compiler_params=pltpu.CompilerParams(
            dimension_semantics=("parallel",)),
        cost_estimate=cost,
    )(xa, w0a_t, wb, bb, wo)

    return jnp.transpose(out_t)                                  # (B, out_N)


def drrnn_reference(x, params, *, depth, matmul_dtype=jnp.float32):
    """Pure-JAX reference mirroring the PyTorch forward.

    With matmul_dtype=jnp.bfloat16 it mirrors the kernel's MXU precision
    (bf16 dot inputs, f32 accumulation, b0 folded into the first matmul).
    """
    dx, dy, dz = x[:, 0:1], x[:, 1:2], x[:, 2:3]

    def mm(a, w):
        return jnp.dot(a.astype(matmul_dtype), w.astype(matmul_dtype),
                       preferred_element_type=jnp.float32)

    xa = jnp.concatenate([x, jnp.ones((x.shape[0], 1), x.dtype)], axis=1)
    w0a = jnp.concatenate([params["w0"], params["b0"]], axis=0)
    h = mm(xa, w0a)
    for d in range(depth):
        t = jnp.tanh(mm(h, params["w1s"][d]) + params["b1s"][d])
        t = jnp.tanh(mm(t, params["w2s"][d]) + params["b2s"][d])
        h = t + h
    out = mm(h, params["wout"]) + params["bout"]
    return out * dx * dy * dz * (1 - dx) * (1 - dy) * (1 - dz)


def init_params(key, in_N, m, depth, out_N):
    ks = jax.random.split(key, 8)
    scale = 0.1
    return {
        "w0":   scale * jax.random.normal(ks[0], (in_N, m), jnp.float32),
        "b0":   scale * jax.random.normal(ks[1], (1, m), jnp.float32),
        "w1s":  scale * jax.random.normal(ks[2], (depth, m, m), jnp.float32),
        "b1s":  scale * jax.random.normal(ks[3], (depth, 1, m), jnp.float32),
        "w2s":  scale * jax.random.normal(ks[4], (depth, m, m), jnp.float32),
        "b2s":  scale * jax.random.normal(ks[5], (depth, 1, m), jnp.float32),
        "wout": scale * jax.random.normal(ks[6], (m, out_N), jnp.float32),
        "bout": scale * jax.random.normal(ks[7], (1, out_N), jnp.float32),
    }


if __name__ == "__main__":
    in_N, m, depth, out_N = 3, 32, 2, 1
    B = 2048          # batch of 3D collocation points
    tb = 512          # grid = B // tb = 4 -> even, >= 4: both v7x cores busy + pipelined
    lc = 256          # inner lane-chunk: live h/t stay ~16 vregs, no spills

    key = jax.random.PRNGKey(0)
    kx, kp = jax.random.split(key)
    x = jax.random.uniform(kx, (B, in_N), jnp.float32)   # points in the unit cube
    params = init_params(kp, in_N, m, depth, out_N)

    out = jax.block_until_ready(drrnn_forward(x, params, depth=depth, tb=tb, lc=lc))
    assert out.shape == (B, out_N)

    # Tight check against a reference that mirrors the kernel's bf16-MXU math.
    ref_bf16 = drrnn_reference(x, params, depth=depth, matmul_dtype=jnp.bfloat16)
    np.testing.assert_allclose(np.asarray(out), np.asarray(ref_bf16),
                               rtol=5e-3, atol=1e-5)
    # Loose sanity check against the full-f32 reference (bf16 dot inputs).
    ref_f32 = drrnn_reference(x, params, depth=depth)
    np.testing.assert_allclose(np.asarray(out), np.asarray(ref_f32),
                               rtol=5e-2, atol=1e-4)

    print("KERNEL_OK")
</pallas_src>

<mosaic_0001>
module attributes {stable_mosaic.version = 11 : i64} {
  func.func @drrnn_kernel(%arg0: i32, %arg1: memref<4x512xf32, #tpu.memory_space<vmem>>, %arg2: memref<32x4xbf16, #tpu.memory_space<vmem>>, %arg3: memref<4x32x32xbf16, #tpu.memory_space<vmem>>, %arg4: memref<4x32x1xf32, #tpu.memory_space<vmem>>, %arg5: memref<1x33xf32, #tpu.memory_space<vmem>>, %arg6: memref<1x512xf32, #tpu.memory_space<vmem>>) attributes {dimension_semantics = [#tpu.dimension_semantics<parallel>], iteration_bounds = array<i64: 4>, scalar_prefetch = 0 : i64, scratch_operands = 0 : i64, tpu.core_type = #tpu.core_type<tc>, window_params = [{transform_indices = @transform_0, window_bounds = array<i64: 4, 512>}, {pipeline_mode = #tpu.pipeline_mode<synchronous>, transform_indices = @transform_1, window_bounds = array<i64: 32, 4>}, {pipeline_mode = #tpu.pipeline_mode<synchronous>, transform_indices = @transform_2, window_bounds = array<i64: 4, 32, 32>}, {pipeline_mode = #tpu.pipeline_mode<synchronous>, transform_indices = @transform_3, window_bounds = array<i64: 4, 32, 1>}, {pipeline_mode = #tpu.pipeline_mode<synchronous>, transform_indices = @transform_4, window_bounds = array<i64: 1, 33>}, {transform_indices = @transform_5, window_bounds = array<i64: 1, 512>}]} {
    %c0 = arith.constant 0 : index
    %c0_0 = arith.constant 0 : index
    %0 = vector.load %arg2[%c0, %c0_0] : memref<32x4xbf16, #tpu.memory_space<vmem>>, vector<32x4xbf16>
    %c0_1 = arith.constant 0 : index
    %c0_2 = arith.constant 0 : index
    %1 = vector.load %arg5[%c0_1, %c0_2] : memref<1x33xf32, #tpu.memory_space<vmem>>, vector<1x32xf32>
    %2 = arith.truncf %1 : vector<1x32xf32> to vector<1x32xbf16>
    %c0_3 = arith.constant 0 : index
    %c32 = arith.constant 32 : index
    %3 = vector.load %arg5[%c0_3, %c32] : memref<1x33xf32, #tpu.memory_space<vmem>>, vector<1x1xf32>
    %c0_i32 = arith.constant 0 : i32
    %c2_i32 = arith.constant 2 : i32
    %4 = arith.addi %c0_i32, %c2_i32 : i32
    %c1_i32 = arith.constant 1 : i32
    scf.for %arg7 = %c0_i32 to %4 step %c1_i32  : i32 {
      %c256_i32 = arith.constant 256 : i32
      %5 = arith.muli %arg7, %c256_i32 : i32
      %6 = tpu.assume_multiple %5, 256 : i32
      %c0_5 = arith.constant 0 : index
      %7 = arith.index_cast %6 : i32 to index
      %8 = vector.load %arg1[%c0_5, %7] : memref<4x512xf32, #tpu.memory_space<vmem>>, vector<4x256xf32>
      %9 = vector.extract_strided_slice %8 {offsets = [0, 0], sizes = [1, 256], strides = [1, 1]} : vector<4x256xf32> to vector<1x256xf32>
      %10 = vector.extract_strided_slice %8 {offsets = [1, 0], sizes = [1, 256], strides = [1, 1]} : vector<4x256xf32> to vector<1x256xf32>
      %11 = vector.extract_strided_slice %8 {offsets = [2, 0], sizes = [1, 256], strides = [1, 1]} : vector<4x256xf32> to vector<1x256xf32>
      %12 = arith.mulf %9, %10 : vector<1x256xf32>
      %13 = arith.mulf %12, %11 : vector<1x256xf32>
      %cst = arith.constant 1.000000e+00 : f32
      %14 = vector.broadcast %cst : f32 to vector<1x256xf32>
      %15 = arith.subf %14, %9 : vector<1x256xf32>
      %16 = arith.mulf %13, %15 : vector<1x256xf32>
      %cst_6 = arith.constant 1.000000e+00 : f32
      %17 = vector.broadcast %cst_6 : f32 to vector<1x256xf32>
      %18 = arith.subf %17, %10 : vector<1x256xf32>
      %19 = arith.mulf %16, %18 : vector<1x256xf32>
      %cst_7 = arith.constant 1.000000e+00 : f32
      %20 = vector.broadcast %cst_7 : f32 to vector<1x256xf32>
      %21 = arith.subf %20, %11 : vector<1x256xf32>
      %22 = arith.mulf %19, %21 : vector<1x256xf32>
      %23 = arith.truncf %8 : vector<4x256xf32> to vector<4x256xbf16>
      %cst_8 = arith.constant dense<0.000000e+00> : vector<32x256xf32>
      %24 = tpu.matmul %0, %23, %cst_8 {dimension_numbers = #tpu.dot_dimension_numbers<[1], [0], [0], [1], [0, 0, 1, 1], [], []>} : vector<32x4xbf16>, vector<4x256xbf16>, vector<32x256xf32> -> vector<32x256xf32>
      %c0_9 = arith.constant 0 : index
      %c0_10 = arith.constant 0 : index
      %c0_11 = arith.constant 0 : index
      %25 = vector.load %arg3[%c0_9, %c0_10, %c0_11] : memref<4x32x32xbf16, #tpu.memory_space<vmem>>, vector<1x32x32xbf16>
      %26 = vector.shape_cast %25 : vector<1x32x32xbf16> to vector<32x32xbf16>
      %27 = arith.truncf %24 : vector<32x256xf32> to vector<32x256xbf16>
      %cst_12 = arith.constant dense<0.000000e+00> : vector<32x256xf32>
      %28 = tpu.matmul %26, %27, %cst_12 {dimension_numbers = #tpu.dot_dimension_numbers<[1], [0], [0], [1], [0, 0, 1, 1], [], []>} : vector<32x32xbf16>, vector<32x256xbf16>, vector<32x256xf32> -> vector<32x256xf32>
      %c0_13 = arith.constant 0 : index
      %c0_14 = arith.constant 0 : index
      %c0_15 = arith.constant 0 : index
      %29 = vector.load %arg4[%c0_13, %c0_14, %c0_15] : memref<4x32x1xf32, #tpu.memory_space<vmem>>, vector<1x32x1xf32>
      %30 = vector.shape_cast %29 : vector<1x32x1xf32> to vector<32x1xf32>
      %31 = vector.broadcast %30 : vector<32x1xf32> to vector<32x256xf32>
      %32 = arith.addf %28, %31 : vector<32x256xf32>
      %33 = math.tanh %32 : vector<32x256xf32>
      %c1 = arith.constant 1 : index
      %c0_16 = arith.constant 0 : index
      %c0_17 = arith.constant 0 : index
      %34 = vector.load %arg3[%c1, %c0_16, %c0_17] : memref<4x32x32xbf16, #tpu.memory_space<vmem>>, vector<1x32x32xbf16>
      %35 = vector.shape_cast %34 : vector<1x32x32xbf16> to vector<32x32xbf16>
      %36 = arith.truncf %33 : vector<32x256xf32> to vector<32x256xbf16>
      %cst_18 = arith.constant dense<0.000000e+00> : vector<32x256xf32>
      %37 = tpu.matmul %35, %36, %cst_18 {dimension_numbers = #tpu.dot_dimension_numbers<[1], [0], [0], [1], [0, 0, 1, 1], [], []>} : vector<32x32xbf16>, vector<32x256xbf16>, vector<32x256xf32> -> vector<32x256xf32>
      %c1_19 = arith.constant 1 : index
      %c0_20 = arith.constant 0 : index
      %c0_21 = arith.constant 0 : index
      %38 = vector.load %arg4[%c1_19, %c0_20, %c0_21] : memref<4x32x1xf32, #tpu.memory_space<vmem>>, vector<1x32x1xf32>
      %39 = vector.shape_cast %38 : vector<1x32x1xf32> to vector<32x1xf32>
      %40 = vector.broadcast %39 : vector<32x1xf32> to vector<32x256xf32>
      %41 = arith.addf %37, %40 : vector<32x256xf32>
      %42 = math.tanh %41 : vector<32x256xf32>
      %43 = arith.addf %42, %24 : vector<32x256xf32>
      %c2 = arith.constant 2 : index
      %c0_22 = arith.constant 0 : index
      %c0_23 = arith.constant 0 : index
      %44 = vector.load %arg3[%c2, %c0_22, %c0_23] : memref<4x32x32xbf16, #tpu.memory_space<vmem>>, vector<1x32x32xbf16>
      %45 = vector.shape_cast %44 : vector<1x32x32xbf16> to vector<32x32xbf16>
      %46 = arith.truncf %43 : vector<32x256xf32> to vector<32x256xbf16>
      %cst_24 = arith.constant dense<0.000000e+00> : vector<32x256xf32>
      %47 = tpu.matmul %45, %46, %cst_24 {dimension_numbers = #tpu.dot_dimension_numbers<[1], [0], [0], [1], [0, 0, 1, 1], [], []>} : vector<32x32xbf16>, vector<32x256xbf16>, vector<32x256xf32> -> vector<32x256xf32>
      %c2_25 = arith.constant 2 : index
      %c0_26 = arith.constant 0 : index
      %c0_27 = arith.constant 0 : index
      %48 = vector.load %arg4[%c2_25, %c0_26, %c0_27] : memref<4x32x1xf32, #tpu.memory_space<vmem>>, vector<1x32x1xf32>
      %49 = vector.shape_cast %48 : vector<1x32x1xf32> to vector<32x1xf32>
      %50 = vector.broadcast %49 : vector<32x1xf32> to vector<32x256xf32>
      %51 = arith.addf %47, %50 : vector<32x256xf32>
      %52 = math.tanh %51 : vector<32x256xf32>
      %c3 = arith.constant 3 : index
      %c0_28 = arith.constant 0 : index
      %c0_29 = arith.constant 0 : index
      %53 = vector.load %arg3[%c3, %c0_28, %c0_29] : memref<4x32x32xbf16, #tpu.memory_space<vmem>>, vector<1x32x32xbf16>
      %54 = vector.shape_cast %53 : vector<1x32x32xbf16> to vector<32x32xbf16>
      %55 = arith.truncf %52 : vector<32x256xf32> to vector<32x256xbf16>
      %cst_30 = arith.constant dense<0.000000e+00> : vector<32x256xf32>
      %56 = tpu.matmul %54, %55, %cst_30 {dimension_numbers = #tpu.dot_dimension_numbers<[1], [0], [0], [1], [0, 0, 1, 1], [], []>} : vector<32x32xbf16>, vector<32x256xbf16>, vector<32x256xf32> -> vector<32x256xf32>
      %c3_31 = arith.constant 3 : index
      %c0_32 = arith.constant 0 : index
      %c0_33 = arith.constant 0 : index
      %57 = vector.load %arg4[%c3_31, %c0_32, %c0_33] : memref<4x32x1xf32, #tpu.memory_space<vmem>>, vector<1x32x1xf32>
      %58 = vector.shape_cast %57 : vector<1x32x1xf32> to vector<32x1xf32>
      %59 = vector.broadcast %58 : vector<32x1xf32> to vector<32x256xf32>
      %60 = arith.addf %56, %59 : vector<32x256xf32>
      %61 = math.tanh %60 : vector<32x256xf32>
      %62 = arith.addf %61, %43 : vector<32x256xf32>
      %63 = arith.truncf %62 : vector<32x256xf32> to vector<32x256xbf16>
      %cst_34 = arith.constant dense<0.000000e+00> : vector<1x256xf32>
      %64 = tpu.matmul %2, %63, %cst_34 {dimension_numbers = #tpu.dot_dimension_numbers<[1], [0], [0], [1], [0, 0, 1, 1], [], []>} : vector<1x32xbf16>, vector<32x256xbf16>, vector<1x256xf32> -> vector<1x256xf32>
      %65 = vector.broadcast %3 : vector<1x1xf32> to vector<1x256xf32>
      %66 = arith.addf %64, %65 : vector<1x256xf32>
      %67 = arith.mulf %66, %22 : vector<1x256xf32>
      %c0_35 = arith.constant 0 : index
      %68 = arith.index_cast %6 : i32 to index
      %69 = vector.load %arg6[%c0_35, %68] : memref<1x512xf32, #tpu.memory_space<vmem>>, vector<1x256xf32>
      tpu.vector_store %arg6[%c0_35, %68], %67 {strides = array<i32>} : memref<1x512xf32, #tpu.memory_space<vmem>>, vector<1x256xf32>,
    }
    %c2_i32_4 = arith.constant 2 : i32
    return
  }
  func.func @transform_0(%arg0: i32) -> (i32, i32) {
    %c0_i32 = arith.constant 0 : i32
    %c0_i32_0 = arith.constant 0 : i32
    return %c0_i32, %arg0 : i32, i32
  }
  func.func @transform_1(%arg0: i32) -> (i32, i32) {
    %c0_i32 = arith.constant 0 : i32
    %c0_i32_0 = arith.constant 0 : i32
    %c0_i32_1 = arith.constant 0 : i32
    return %c0_i32, %c0_i32_0 : i32, i32
  }
  func.func @transform_2(%arg0: i32) -> (i32, i32, i32) {
    %c0_i32 = arith.constant 0 : i32
    %c0_i32_0 = arith.constant 0 : i32
    %c0_i32_1 = arith.constant 0 : i32
    %c0_i32_2 = arith.constant 0 : i32
    return %c0_i32, %c0_i32_0, %c0_i32_1 : i32, i32, i32
  }
  func.func @transform_3(%arg0: i32) -> (i32, i32, i32) {
    %c0_i32 = arith.constant 0 : i32
    %c0_i32_0 = arith.constant 0 : i32
    %c0_i32_1 = arith.constant 0 : i32
    %c0_i32_2 = arith.constant 0 : i32
    return %c0_i32, %c0_i32_0, %c0_i32_1 : i32, i32, i32
  }
  func.func @transform_4(%arg0: i32) -> (i32, i32) {
    %c0_i32 = arith.constant 0 : i32
    %c0_i32_0 = arith.constant 0 : i32
    %c0_i32_1 = arith.constant 0 : i32
    return %c0_i32, %c0_i32_0 : i32, i32
  }
  func.func @transform_5(%arg0: i32) -> (i32, i32) {
    %c0_i32 = arith.constant 0 : i32
    %c0_i32_0 = arith.constant 0 : i32
    return %c0_i32, %arg0 : i32, i32
  }
}

</mosaic_0001>

<llo_original>
// kernel: tpu_custom_call.1
$region0: #{tpu_custom_call.1}
  #allocation0 [shape = 'u32[]', space=smem, size = 0x4, offset = 0x4, fixed_abs, tag = 'smem constant byte address 0x4 - core index']
  #allocation1 [shape = 'u32[144,128]{1,0:T(1,128)}', space=vmem, size = 0x12000, scoped, tag = 'internal scratch']
  %s0 = inlined_call_operand.vmem [shape: f32[4,2048], index: 0, kind: input, shape index: {}]
  %s1 = inlined_call_operand.vmem [shape: bf16[32,4], index: 1, kind: input, shape index: {}]
  %s2 = inlined_call_operand.vmem [shape: bf16[4,32,32], index: 2, kind: input, shape index: {}]
  %s3 = inlined_call_operand.vmem [shape: f32[4,32,1], index: 3, kind: input, shape index: {}]
  %s4 = inlined_call_operand.vmem [shape: f32[1,33], index: 4, kind: input, shape index: {}]
  %s5 = inlined_call_operand.hbm [shape: f32[1,2048], index: 5, kind: output, shape index: {}]
  %s6 = sld [smem:[#allocation0]]
  $region60: #{tpu_custom_call.1} parent=0
    _
  %s8 = ssub.s32 1, %s6
  %s9 = scalar_select 0, %s8, %s6
  $region1: #{tpu_custom_call.1} parent=0
    #allocation2 [shape = 'u8[4096]{0}', space=vmem, size = 0x1000, scoped, tag = 'output window, operand 0']
    #allocation3 [shape = 's32[2]{0}', space=sflag, size = 0x8, scoped, tag = 'scoped memory for tpu_custom_call.1']
    %10 = vsyncpa [#allocation3], 0
    %s11 = scalar_lea.sflag [#allocation3], 1
    %12 = vsyncpa %s11, 0
    loop: start=0, step=1, limit=6
    $region2: #{tpu_custom_call.1} parent=1 // loop_pre_header
      _
    $region3: #{tpu_custom_call.1} parent=1 // loop_header
      %s14 = sphi 0, %s18
      %p15 = scmp.ge.s32.totalorder %s14, 6
      %s24 = sphi 0, %s26
      %s27 = sphi 0, %s24
      %s28 = sphi 0, %s27
      %s44 = sphi 0, %s28
      %s48 = sphi 0, %s48
      %s50 = sphi 0, %s48
      %s51 = sphi 0, %s50
      %s65 = sphi 0, %s51
      %s69 = sphi 0, %s69
      %s71 = sphi 0, %s69
      %s72 = sphi 0, %s71
      %s86 = sphi 0, %s72
      %s90 = sphi 0, %s90
      %s92 = sphi 0, %s90
      %s93 = sphi 0, %s92
      %s107 = sphi 0, %s93
      %s111 = sphi 0, %s111
      %s113 = sphi 0, %s111
      %s114 = sphi 0, %s113
      %s128 = sphi 0, %s114
      %s134 = sphi 0, %s136
      %s137 = sphi 0, %s134
      %s138 = sphi 0, %s137
      %s154 = sphi 0, %s138
    $region4: #{tpu_custom_call.1} parent=1 // loop_header_branch
      %17 = sbr.rel (%p15) target = $region8
    $region5: #{tpu_custom_call.1} parent=1 // loop_body
      %s19 = ssub.s32 %s14, 1
      %s20 = ssub.s32 %s14, 2
      %s21 = sadd.s32 %s14, 1
      %s22 = ssub.s32 %s14, %s21
      %p23 = scmp.eq.s32.totalorder %s22, 0
      %s25 = sadd.s32 %s24, 1
      %s26 = scalar_select %p23, %s24, %s25
      %p29 = pneg %p23
      %p30 = scmp.eq.s32.totalorder %s14, 3
      %p31 = por %p29, %p30
      %p32 = scmp.ne.s32.totalorder %s24, %s27
      %p33 = scmp.eq.s32.totalorder %s14, 0
      %p34 = por %p32, %p33
      %p35 = scmp.ne.s32.totalorder %s24, %s27
      %p36 = scmp.eq.s32.totalorder %s19, 3
      %p37 = por %p35, %p36
      %p38 = scmp.ne.s32.totalorder %s27, %s28
      %p39 = scmp.eq.s32.totalorder %s19, 0
      %p40 = por %p38, %p39
      %p41 = scmp.ne.s32.totalorder %s27, %s28
      %p42 = scmp.eq.s32.totalorder %s20, 3
      %p43 = por %p41, %p42
      %p45 = scmp.ne.s32.totalorder %s28, %s44
      %p46 = scmp.eq.s32.totalorder %s20, 0
      %p47 = por %p45, %p46
      %s49 = sadd.s32 %s48, 1
      %p52 = scmp.eq.s32.totalorder %s14, 3
      %p53 = scmp.ne.s32.totalorder %s48, %s50
      %p54 = scmp.eq.s32.totalorder %s14, 0
      %p55 = por %p53, %p54
      %p56 = scmp.ne.s32.totalorder %s48, %s50
      %p57 = scmp.eq.s32.totalorder %s19, 3
      %p58 = por %p56, %p57
      %p59 = scmp.ne.s32.totalorder %s50, %s51
      %p60 = scmp.eq.s32.totalorder %s19, 0
      %p61 = por %p59, %p60
      %p62 = scmp.ne.s32.totalorder %s50, %s51
      %p63 = scmp.eq.s32.totalorder %s20, 3
      %p64 = por %p62, %p63
      %p66 = scmp.ne.s32.totalorder %s51, %s65
      %p67 = scmp.eq.s32.totalorder %s20, 0
      %p68 = por %p66, %p67
      %s70 = sadd.s32 %s69, 1
      %p73 = scmp.eq.s32.totalorder %s14, 3
      %p74 = scmp.ne.s32.totalorder %s69, %s71
      %p75 = scmp.eq.s32.totalorder %s14, 0
      %p76 = por %p74, %p75
      %p77 = scmp.ne.s32.totalorder %s69, %s71
      %p78 = scmp.eq.s32.totalorder %s19, 3
      %p79 = por %p77, %p78
      %p80 = scmp.ne.s32.totalorder %s71, %s72
      %p81 = scmp.eq.s32.totalorder %s19, 0
      %p82 = por %p80, %p81
      %p83 = scmp.ne.s32.totalorder %s71, %s72
      %p84 = scmp.eq.s32.totalorder %s20, 3
      %p85 = por %p83, %p84
      %p87 = scmp.ne.s32.totalorder %s72, %s86
      %p88 = scmp.eq.s32.totalorder %s20, 0
      %p89 = por %p87, %p88
      %s91 = sadd.s32 %s90, 1
      %p94 = scmp.eq.s32.totalorder %s14, 3
      %p95 = scmp.ne.s32.totalorder %s90, %s92
      %p96 = scmp.eq.s32.totalorder %s14, 0
      %p97 = por %p95, %p96
      %p98 = scmp.ne.s32.totalorder %s90, %s92
      %p99 = scmp.eq.s32.totalorder %s19, 3
      %p100 = por %p98, %p99
      %p101 = scmp.ne.s32.totalorder %s92, %s93
      %p102 = scmp.eq.s32.totalorder %s19, 0
      %p103 = por %p101, %p102
      %p104 = scmp.ne.s32.totalorder %s92, %s93
      %p105 = scmp.eq.s32.totalorder %s20, 3
      %p106 = por %p104, %p105
      %p108 = scmp.ne.s32.totalorder %s93, %s107
      %p109 = scmp.eq.s32.totalorder %s20, 0
      %p110 = por %p108, %p109
      %s112 = sadd.s32 %s111, 1
      %p115 = scmp.eq.s32.totalorder %s14, 3
      %p116 = scmp.ne.s32.totalorder %s111, %s113
      %p117 = scmp.eq.s32.totalorder %s14, 0
      %p118 = por %p116, %p117
      %p119 = scmp.ne.s32.totalorder %s111, %s113
      %p120 = scmp.eq.s32.totalorder %s19, 3
      %p121 = por %p119, %p120
      %p122 = scmp.ne.s32.totalorder %s113, %s114
      %p123 = scmp.eq.s32.totalorder %s19, 0
      %p124 = por %p122, %p123
      %p125 = scmp.ne.s32.totalorder %s113, %s114
      %p126 = scmp.eq.s32.totalorder %s20, 3
      %p127 = por %p125, %p126
      %p129 = scmp.ne.s32.totalorder %s114, %s128
      %p130 = scmp.eq.s32.totalorder %s20, 0
      %p131 = por %p129, %p130
      %s132 = ssub.s32 %s14, %s21
      %p133 = scmp.eq.s32.totalorder %s132, 0
      %s135 = sadd.s32 %s134, 1
      %s136 = scalar_select %p133, %s134, %s135
      %p139 = pneg %p133
      %p140 = scmp.eq.s32.totalorder %s14, 3
      %p141 = por %p139, %p140
      %p142 = scmp.ne.s32.totalorder %s134, %s137
      %p143 = scmp.eq.s32.totalorder %s14, 0
      %p144 = por %p142, %p143
      %p145 = scmp.ne.s32.totalorder %s134, %s137
      %p146 = scmp.eq.s32.totalorder %s19, 3
      %p147 = por %p145, %p146
      %p148 = scmp.ne.s32.totalorder %s137, %s138
      %p149 = scmp.eq.s32.totalorder %s19, 0
      %p150 = por %p148, %p149
      %p151 = scmp.ne.s32.totalorder %s137, %s138
      %p152 = scmp.eq.s32.totalorder %s20, 3
      %p153 = por %p151, %p152
      %p155 = scmp.ne.s32.totalorder %s138, %s154
      %p156 = scmp.eq.s32.totalorder %s20, 0
      %p157 = por %p155, %p156
      %p158 = scmp.le.s32.totalorder 1, %s14
      %p159 = scmp.lt.s32.totalorder %s14, 5
      %p160 = pnand %p158, %p159
      %p161 = pneg %p160
      // Predicated region
      $region9: #{tpu_custom_call.1} parent=5 // pred_check
        _
      $region10: #{tpu_custom_call.1} parent=5 // pred_check_branch
        %163 = sbr.rel (%p160) target = $region12
      $region11: #{tpu_custom_call.1} parent=5 // pred_region
        %s164 = ssub.s32 %s14, 1
        // Predicated region
        $region13: #{tpu_custom_call.1} parent=11 // pred_check
          %p165 = pneg %p61
        $region14: #{tpu_custom_call.1} parent=11 // pred_check_branch
          %167 = sbr.rel (%p165) target = $region16
        $region15: #{tpu_custom_call.1} parent=11 // pred_region
          _
        $region16: #{tpu_custom_call.1} parent=11 // pred_fallthru
          _
        // Predicated region
        $region17: #{tpu_custom_call.1} parent=11 // pred_check
          %p168 = pneg %p82
        $region18: #{tpu_custom_call.1} parent=11 // pred_check_branch
          %170 = sbr.rel (%p168) target = $region20
        $region19: #{tpu_custom_call.1} parent=11 // pred_region
          _
        $region20: #{tpu_custom_call.1} parent=11 // pred_fallthru
          _
        // Predicated region
        $region21: #{tpu_custom_call.1} parent=11 // pred_check
          %p171 = pneg %p103
        $region22: #{tpu_custom_call.1} parent=11 // pred_check_branch
          %173 = sbr.rel (%p171) target = $region24
        $region23: #{tpu_custom_call.1} parent=11 // pred_region
          _
        $region24: #{tpu_custom_call.1} parent=11 // pred_fallthru
          _
        // Predicated region
        $region25: #{tpu_custom_call.1} parent=11 // pred_check
          %p174 = pneg %p124
        $region26: #{tpu_custom_call.1} parent=11 // pred_check_branch
          %176 = sbr.rel (%p174) target = $region28
        $region27: #{tpu_custom_call.1} parent=11 // pred_region
          _
        $region28: #{tpu_custom_call.1} parent=11 // pred_fallthru
          _
      $region12: #{tpu_custom_call.1} parent=5 // pred_fallthru
        _
      %p177 = scmp.lt.s32.totalorder %s14, 4
      // Predicated region
      $region29: #{tpu_custom_call.1} parent=5 // pred_check
        %p178 = pneg %p177
      $region30: #{tpu_custom_call.1} parent=5 // pred_check_branch
        %180 = sbr.rel (%p178) target = $region32
      $region31: #{tpu_custom_call.1} parent=5 // pred_region
        // Predicated region
        $region33: #{tpu_custom_call.1} parent=31 // pred_check
          %p181 = pneg %p34
        $region34: #{tpu_custom_call.1} parent=31 // pred_check_branch
          %183 = sbr.rel (%p181) target = $region36
        $region35: #{tpu_custom_call.1} parent=31 // pred_region
          %s184 = smul.u32 4, %s14
          %p185 = scmp.lt.s32.totalorder %s184, 15
          %s186 = scalar_select %p185, %s184, 15
          %s187 = smul.addr %s186, 4
          %s188 = scalar_lea.vmem %s0, %s187
          %s189 = smul.u32 4, %s14
        $region36: #{tpu_custom_call.1} parent=31 // pred_fallthru
          _
      $region32: #{tpu_custom_call.1} parent=5 // pred_fallthru
        _
      %p190 = scmp.le.s32.totalorder 1, %s14
      %p191 = scmp.lt.s32.totalorder %s14, 5
      %p192 = pnand %p190, %p191
      %p193 = pneg %p192
      // Predicated region
      $region37: #{tpu_custom_call.1} parent=5 // pred_check
        _
      $region38: #{tpu_custom_call.1} parent=5 // pred_check_branch
        %195 = sbr.rel (%p192) target = $region40
      $region39: #{tpu_custom_call.1} parent=5 // pred_region
        %s196 = ssub.s32 %s14, 1
        %s197 = smul.u32 4, %s19
        %p198 = scmp.lt.s32.totalorder %s197, 15
        %s199 = scalar_select %p198, %s197, 15
        %s200 = smul.addr %s199, 4
        %s201 = scalar_lea.vmem %s0, %s200
        %p202 = pneg %p40
        %p203 = pneg %p37
        %p204 = pneg %p61
        %p205 = pneg %p58
        %p206 = pneg %p82
        %p207 = pneg %p79
        %p208 = pneg %p103
        %p209 = pneg %p100
        %p210 = pneg %p124
        %p211 = pneg %p121
        %p212 = pneg %p150
        %p213 = pneg %p147
        %s214 = sand.u32 %s137, 1
        %s215 = scalar_lea.sflag [#allocation3], %s214
        %s216 = sand.u32 %s137, 1
        %s217 = smul.addr %s216, 4
        %s218 = scalar_lea.vmem [#allocation2], %s217
        %s219 = smul.u32 4, %s19
        %p220 = scmp.lt.s32.totalorder %s219, 15
        %s221 = scalar_select %p220, %s219, 15
        %s222 = smul.addr %s221, 4
        %s223 = scalar_lea.vmem %s0, %s222
        %s224 = smul.u32 4, %s19
        %s225 = smul.u32 4, %s19
        %v227 = vld [vmem:[%s1] sm:$0xf]
        %v228 = vld [vmem:[%s1 + $0x4] sm:$0xf]
        %v229 = vld [vmem:[%s1 + $0x8] sm:$0xf]
        %v230 = vld [vmem:[%s1 + $0xc] sm:$0xf]
        %v231 = vld [vmem:[%s4] sm:$0x1]
        %v232 = vpack.c.bf16 %v231, %v231
        loop: start=0, step=1, limit=2
        $region41: #{tpu_custom_call.1} parent=39 // loop_pre_header
          _
        $region42: #{tpu_custom_call.1} parent=39 // loop_header
          %s234 = sphi 0, %s238
          %p235 = scmp.ge.s32.totalorder %s234, 2
        $region43: #{tpu_custom_call.1} parent=39 // loop_header_branch
          %237 = sbr.rel (%p235) target = $region47
        $region44: #{tpu_custom_call.1} parent=39 // loop_body
          %s239 = smul.u32 %s234, 256
          %s240 = sshra.s32 %s239, 7
          %s241 = sand.u32 %s239, 127
          %s242 = smul.addr %s240, 4
          %s243 = scalar_lea.vmem %s223, %s242
          %v244 = vld [vmem:[%s243] sm:$0xff]
          %v246 = vrot.slane %v244, 5
          %v247 = vrot.slane %v246, 4
          %v249 = vmul.f32 %v244, %v247
          %v250 = vrot.slane %v244, 6
          %v251 = vrot.slane %v250, 4
          %v253 = vmul.f32 %v249, %v251
          %v254 = vsub.f32 1.0, %v244
          %v255 = vmul.f32 %v253, %v254
          %v257 = vrot.slane %v254, 5
          %v258 = vrot.slane %v257, 4
          %v260 = vmul.f32 %v255, %v258
          %v261 = vrot.slane %v254, 6
          %v262 = vrot.slane %v261, 4
          %v264 = vmul.f32 %v260, %v262
          %v265 = vcombine.high %v244, %v244
          %v267 = vpack.c.bf16 %v244, %v244
          %v268 = vpack.c.bf16 %v265, %v265
          %v273 = vunpack.c.l.b16 %v227
          %v274 = vunpack.c.l.b16 %v228
          %v275 = vunpack.c.l.b16 %v229
          %v276 = vunpack.c.l.b16 %v230
          %v277 = vpack.c.b16 %v274, %v273
          %v278 = vpack.c.b16 %v276, %v275
          %vm279 = vcmask 31744
          %v281 = vsel %vm279, %v277, 0
          %v284 = vsel %vm279, %v278, 0
          %vm286 = vcmask 1041408
          %v288 = vsel %vm286, %v267, 0
          %v291 = vsel %vm286, %v268, 0
          %293 = vmatprep.subr.bf16.mxu0 %v291
          %294 = vmatpush1.bf16.msra.mxu0 %v288
          %295 = vmatprep.subr.bf16.mxu0 0
          %296 = vmatpush1.bf16.msra.mxu0 0
          %297 = vmatprep.subr.bf16.mxu0 0
          %298 = vmatpush1.bf16.msra.mxu0 0
          %299 = vmatprep.subr.bf16.mxu0 0
          %300 = vmatpush1.bf16.msra.mxu0 0
          %301 = vmatprep.subr.bf16.mxu0 0
          %302 = vmatpush1.bf16.msra.mxu0 0
          %303 = vmatprep.subr.bf16.mxu0 0
          %304 = vmatpush1.bf16.msra.mxu0 0
          %305 = vmatprep.subr.bf16.mxu0 0
          %306 = vmatpush1.bf16.msra.mxu0 0
          %307 = vmatprep.subr.bf16.mxu0 0
          %308 = vmatpush1.bf16.msra.mxu0 0
          %309 = vmatprep.subr.bf16.mxu0 0
          %310 = vmatpush1.bf16.msra.mxu0 0
          %311 = vmatprep.subr.bf16.mxu0 0
          %312 = vmatpush1.bf16.msra.mxu0 0
          %313 = vmatprep.subr.bf16.mxu0 0
          %314 = vmatpush1.bf16.msra.mxu0 0
          %315 = vmatprep.subr.bf16.mxu0 0
          %316 = vmatpush1.bf16.msra.mxu0 0
          %317 = vmatprep.subr.bf16.mxu0 0
          %318 = vmatpush1.bf16.msra.mxu0 0
          %319 = vmatprep.subr.bf16.mxu0 0
          %320 = vmatpush1.bf16.msra.mxu0 0
          %321 = vmatprep.subr.bf16.mxu0 0
          %322 = vmatpush1.bf16.msra.mxu0 0
          %323 = vmatprep.subr.bf16.mxu0 0
          %324 = vmatpush1.bf16.msra.mxu0 0
          %325 = vmatprep.mubr.bf16.mxu0 0
          %326 = vmatmul.mubr.bf16.gmra.mrb[0].mxu0 %v281
          %v327 = vpop.f32.mrb[0].mxu0
          %v328 = vadd.f32 0.0, %v327
          %v329 = vpop.f32.mrb[0].mxu0
          %v330 = vadd.f32 0.0, %v329
          %v331 = vpop.f32.mrb[0].mxu0
          %v332 = vadd.f32 0.0, %v331
          %v333 = vpop.f32.mrb[0].mxu0
          %v334 = vadd.f32 0.0, %v333
          %335 = vmatprep.mubr.bf16.mxu0 0
          %336 = vmatmul.mubr.bf16.gmra.mrb[0].mxu0 %v284
          %v337 = vpop.f32.mrb[0].mxu0
          %v338 = vadd.f32 0.0, %v337
          %v339 = vpop.f32.mrb[0].mxu0
          %v340 = vadd.f32 0.0, %v339
          %v341 = vpop.f32.mrb[0].mxu0
          %v342 = vadd.f32 0.0, %v341
          %v343 = vpop.f32.mrb[0].mxu0
          %v344 = vadd.f32 0.0, %v343
          %345 = vdwg.mxu0
          %v346 = vld [vmem:[%s2] sm:$0xf]
          %v347 = vld [vmem:[%s2 + $0x4] sm:$0xf]
          %v348 = vld [vmem:[%s2 + $0x8] sm:$0xf]
          %v349 = vld [vmem:[%s2 + $0xc] sm:$0xf]
          %v350 = vpack.c.bf16 %v332, %v328
          %v351 = vpack.c.bf16 %v334, %v330
          %v352 = vpack.c.bf16 %v342, %v338
          %v353 = vpack.c.bf16 %v344, %v340
          %v354 = vld [vmem:[%s3] sm:$0xff]
          %v355 = vld [vmem:[%s3 + $0x8] sm:$0xff]
          %v356 = vld [vmem:[%s3 + $0x10] sm:$0xff]
          %v357 = vld [vmem:[%s3 + $0x18] sm:$0xff]
          %359 = vset.pattern.permute.xlu0 0
          %360 = vperm.xlu0 %359, %v354
          %v361 = vpop.permute.xlu0 %360
          %364 = vset.pattern.permute.xlu0 0
          %365 = vperm.xlu0 %364, %v355
          %v366 = vpop.permute.xlu0 %365
          %369 = vset.pattern.permute.xlu0 0
          %370 = vperm.xlu0 %369, %v356
          %v371 = vpop.permute.xlu0 %370
          %374 = vset.pattern.permute.xlu0 0
          %375 = vperm.xlu0 %374, %v357
          %v376 = vpop.permute.xlu0 %375
          %v382 = vunpack.c.l.b16 %v346
          %v383 = vunpack.c.l.b16 %v347
          %v384 = vunpack.c.l.b16 %v348
          %v385 = vunpack.c.l.b16 %v349
          %v386 = vpack.c.b16 %v383, %v382
          %v387 = vpack.c.b16 %v385, %v384
          %vm388 = vcmask 261120
          %v390 = vsel %vm388, %v386, 0
          %v393 = vsel %vm388, %v387, 0
          %395 = vmatprep.subr.bf16.mxu0 %v351
          %396 = vmatpush1.bf16.msra.mxu0 %v350
          %397 = vmatprep.subr.bf16.mxu0 %v353
          %398 = vmatpush1.bf16.msra.mxu0 %v352
          %399 = vmatprep.subr.bf16.mxu0 0
          %400 = vmatpush1.bf16.msra.mxu0 0
          %401 = vmatprep.subr.bf16.mxu0 0
          %402 = vmatpush1.bf16.msra.mxu0 0
          %403 = vmatprep.subr.bf16.mxu0 0
          %404 = vmatpush1.bf16.msra.mxu0 0
          %405 = vmatprep.subr.bf16.mxu0 0
          %406 = vmatpush1.bf16.msra.mxu0 0
          %407 = vmatprep.subr.bf16.mxu0 0
          %408 = vmatpush1.bf16.msra.mxu0 0
          %409 = vmatprep.subr.bf16.mxu0 0
          %410 = vmatpush1.bf16.msra.mxu0 0
          %411 = vmatprep.subr.bf16.mxu0 0
          %412 = vmatpush1.bf16.msra.mxu0 0
          %413 = vmatprep.subr.bf16.mxu0 0
          %414 = vmatpush1.bf16.msra.mxu0 0
          %415 = vmatprep.subr.bf16.mxu0 0
          %416 = vmatpush1.bf16.msra.mxu0 0
          %417 = vmatprep.subr.bf16.mxu0 0
          %418 = vmatpush1.bf16.msra.mxu0 0
          %419 = vmatprep.subr.bf16.mxu0 0
          %420 = vmatpush1.bf16.msra.mxu0 0
          %421 = vmatprep.subr.bf16.mxu0 0
          %422 = vmatpush1.bf16.msra.mxu0 0
          %423 = vmatprep.subr.bf16.mxu0 0
          %424 = vmatpush1.bf16.msra.mxu0 0
          %425 = vmatprep.subr.bf16.mxu0 0
          %426 = vmatpush1.bf16.msra.mxu0 0
          %427 = vmatprep.mubr.bf16.mxu0 0
          %428 = vmatmul.mubr.bf16.gmra.mrb[0].mxu0 %v390
          %v429 = vpop.f32.mrb[0].mxu0
          %v430 = vadd.f32 %v361, %v429
          %v431 = vpop.f32.mrb[0].mxu0
          %v432 = vadd.f32 %v361, %v431
          %v433 = vpop.f32.mrb[0].mxu0
          %v434 = vadd.f32 %v366, %v433
          %v435 = vpop.f32.mrb[0].mxu0
          %v436 = vadd.f32 %v366, %v435
          %437 = vmatprep.mubr.bf16.mxu0 0
          %438 = vmatmul.mubr.bf16.gmra.mrb[0].mxu0 %v393
          %v439 = vpop.f32.mrb[0].mxu0
          %v440 = vadd.f32 %v371, %v439
          %v441 = vpop.f32.mrb[0].mxu0
          %v442 = vadd.f32 %v371, %v441
          %v443 = vpop.f32.mrb[0].mxu0
          %v444 = vadd.f32 %v376, %v443
          %v445 = vpop.f32.mrb[0].mxu0
          %v446 = vadd.f32 %v376, %v445
          %447 = vdwg.mxu0
          %v448 = vtanh.pop %v430
          %v449 = vtanh.pop %v432
          %v450 = vtanh.pop %v434
          %v451 = vtanh.pop %v436
          %v452 = vtanh.pop %v440
          %v453 = vtanh.pop %v442
          %v454 = vtanh.pop %v444
          %v455 = vtanh.pop %v446
          %s456 = scalar_lea.vmem %s2, 16
          %v457 = vld [vmem:[%s456] sm:$0xf]
          %v458 = vld [vmem:[%s456 + $0x4] sm:$0xf]
          %v459 = vld [vmem:[%s456 + $0x8] sm:$0xf]
          %v460 = vld [vmem:[%s456 + $0xc] sm:$0xf]
          %v461 = vpack.c.bf16 %v450, %v448
          %v462 = vpack.c.bf16 %v451, %v449
          %v463 = vpack.c.bf16 %v454, %v452
          %v464 = vpack.c.bf16 %v455, %v453
          %s465 = scalar_lea.vmem %s3, 32
          %v466 = vld [vmem:[%s465] sm:$0xff]
          %v467 = vld [vmem:[%s465 + $0x8] sm:$0xff]
          %v468 = vld [vmem:[%s465 + $0x10] sm:$0xff]
          %v469 = vld [vmem:[%s465 + $0x18] sm:$0xff]
          %471 = vset.pattern.permute.xlu0 0
          %472 = vperm.xlu0 %471, %v466
          %v473 = vpop.permute.xlu0 %472
          %476 = vset.pattern.permute.xlu0 0
          %477 = vperm.xlu0 %476, %v467
          %v478 = vpop.permute.xlu0 %477
          %481 = vset.pattern.permute.xlu0 0
          %482 = vperm.xlu0 %481, %v468
          %v483 = vpop.permute.xlu0 %482
          %486 = vset.pattern.permute.xlu0 0
          %487 = vperm.xlu0 %486, %v469
          %v488 = vpop.permute.xlu0 %487
          %v494 = vunpack.c.l.b16 %v457
          %v495 = vunpack.c.l.b16 %v458
          %v496 = vunpack.c.l.b16 %v459
          %v497 = vunpack.c.l.b16 %v460
          %v498 = vpack.c.b16 %v495, %v494
          %v499 = vpack.c.b16 %v497, %v496
          %v501 = vsel %vm388, %v498, 0
          %v504 = vsel %vm388, %v499, 0
          %506 = vmatprep.subr.bf16.mxu0 %v462
          %507 = vmatpush1.bf16.msra.mxu0 %v461
          %508 = vmatprep.subr.bf16.mxu0 %v464
          %509 = vmatpush1.bf16.msra.mxu0 %v463
          %510 = vmatprep.subr.bf16.mxu0 0
          %511 = vmatpush1.bf16.msra.mxu0 0
          %512 = vmatprep.subr.bf16.mxu0 0
          %513 = vmatpush1.bf16.msra.mxu0 0
          %514 = vmatprep.subr.bf16.mxu0 0
          %515 = vmatpush1.bf16.msra.mxu0 0
          %516 = vmatprep.subr.bf16.mxu0 0
          %517 = vmatpush1.bf16.msra.mxu0 0
          %518 = vmatprep.subr.bf16.mxu0 0
          %519 = vmatpush1.bf16.msra.mxu0 0
          %520 = vmatprep.subr.bf16.mxu0 0
          %521 = vmatpush1.bf16.msra.mxu0 0
          %522 = vmatprep.subr.bf16.mxu0 0
          %523 = vmatpush1.bf16.msra.mxu0 0
          %524 = vmatprep.subr.bf16.mxu0 0
          %525 = vmatpush1.bf16.msra.mxu0 0
          %526 = vmatprep.subr.bf16.mxu0 0
          %527 = vmatpush1.bf16.msra.mxu0 0
          %528 = vmatprep.subr.bf16.mxu0 0
          %529 = vmatpush1.bf16.msra.mxu0 0
          %530 = vmatprep.subr.bf16.mxu0 0
          %531 = vmatpush1.bf16.msra.mxu0 0
          %532 = vmatprep.subr.bf16.mxu0 0
          %533 = vmatpush1.bf16.msra.mxu0 0
          %534 = vmatprep.subr.bf16.mxu0 0
          %535 = vmatpush1.bf16.msra.mxu0 0
          %536 = vmatprep.subr.bf16.mxu0 0
          %537 = vmatpush1.bf16.msra.mxu0 0
          %538 = vmatprep.mubr.bf16.mxu0 0
          %539 = vmatmul.mubr.bf16.gmra.mrb[0].mxu0 %v501
          %v540 = vpop.f32.mrb[0].mxu0
          %v541 = vadd.f32 %v473, %v540
          %v542 = vpop.f32.mrb[0].mxu0
          %v543 = vadd.f32 %v473, %v542
          %v544 = vpop.f32.mrb[0].mxu0
          %v545 = vadd.f32 %v478, %v544
          %v546 = vpop.f32.mrb[0].mxu0
          %v547 = vadd.f32 %v478, %v546
          %548 = vmatprep.mubr.bf16.mxu0 0
          %549 = vmatmul.mubr.bf16.gmra.mrb[0].mxu0 %v504
          %v550 = vpop.f32.mrb[0].mxu0
          %v551 = vadd.f32 %v483, %v550
          %v552 = vpop.f32.mrb[0].mxu0
          %v553 = vadd.f32 %v483, %v552
          %v554 = vpop.f32.mrb[0].mxu0
          %v555 = vadd.f32 %v488, %v554
          %v556 = vpop.f32.mrb[0].mxu0
          %v557 = vadd.f32 %v488, %v556
          %558 = vdwg.mxu0
          %v559 = vtanh.pop %v541
          %v560 = vtanh.pop %v543
          %v561 = vtanh.pop %v545
          %v562 = vtanh.pop %v547
          %v563 = vtanh.pop %v551
          %v564 = vtanh.pop %v553
          %v565 = vtanh.pop %v555
          %v566 = vtanh.pop %v557
          %v567 = vadd.f32 %v559, %v328
          %v568 = vadd.f32 %v560, %v330
          %v569 = vadd.f32 %v561, %v332
          %v570 = vadd.f32 %v562, %v334
          %v571 = vadd.f32 %v563, %v338
          %v572 = vadd.f32 %v564, %v340
          %v573 = vadd.f32 %v565, %v342
          %v574 = vadd.f32 %v566, %v344
          %s575 = scalar_lea.vmem %s2, 32
          %v576 = vld [vmem:[%s575] sm:$0xf]
          %v577 = vld [vmem:[%s575 + $0x4] sm:$0xf]
          %v578 = vld [vmem:[%s575 + $0x8] sm:$0xf]
          %v579 = vld [vmem:[%s575 + $0xc] sm:$0xf]
          %v580 = vpack.c.bf16 %v569, %v567
          %v581 = vpack.c.bf16 %v570, %v568
          %v582 = vpack.c.bf16 %v573, %v571
          %v583 = vpack.c.bf16 %v574, %v572
          %s584 = scalar_lea.vmem %s3, 64
          %v585 = vld [vmem:[%s584] sm:$0xff]
          %v586 = vld [vmem:[%s584 + $0x8] sm:$0xff]
          %v587 = vld [vmem:[%s584 + $0x10] sm:$0xff]
          %v588 = vld [vmem:[%s584 + $0x18] sm:$0xff]
          %590 = vset.pattern.permute.xlu0 0
          %591 = vperm.xlu0 %590, %v585
          %v592 = vpop.permute.xlu0 %591
          %595 = vset.pattern.permute.xlu0 0
          %596 = vperm.xlu0 %595, %v586
          %v597 = vpop.permute.xlu0 %596
          %600 = vset.pattern.permute.xlu0 0
          %601 = vperm.xlu0 %600, %v587
          %v602 = vpop.permute.xlu0 %601
          %605 = vset.pattern.permute.xlu0 0
          %606 = vperm.xlu0 %605, %v588
          %v607 = vpop.permute.xlu0 %606
          %v613 = vunpack.c.l.b16 %v576
          %v614 = vunpack.c.l.b16 %v577
          %v615 = vunpack.c.l.b16 %v578
          %v616 = vunpack.c.l.b16 %v579
          %v617 = vpack.c.b16 %v614, %v613
          %v618 = vpack.c.b16 %v616, %v615
          %v620 = vsel %vm388, %v617, 0
          %v623 = vsel %vm388, %v618, 0
          %625 = vmatprep.subr.bf16.mxu0 %v581
          %626 = vmatpush1.bf16.msra.mxu0 %v580
          %627 = vmatprep.subr.bf16.mxu0 %v583
          %628 = vmatpush1.bf16.msra.mxu0 %v582
          %629 = vmatprep.subr.bf16.mxu0 0
          %630 = vmatpush1.bf16.msra.mxu0 0
          %631 = vmatprep.subr.bf16.mxu0 0
          %632 = vmatpush1.bf16.msra.mxu0 0
          %633 = vmatprep.subr.bf16.mxu0 0
          %634 = vmatpush1.bf16.msra.mxu0 0
          %635 = vmatprep.subr.bf16.mxu0 0
          %636 = vmatpush1.bf16.msra.mxu0 0
          %637 = vmatprep.subr.bf16.mxu0 0
          %638 = vmatpush1.bf16.msra.mxu0 0
          %639 = vmatprep.subr.bf16.mxu0 0
          %640 = vmatpush1.bf16.msra.mxu0 0
          %641 = vmatprep.subr.bf16.mxu0 0
          %642 = vmatpush1.bf16.msra.mxu0 0
          %643 = vmatprep.subr.bf16.mxu0 0
          %644 = vmatpush1.bf16.msra.mxu0 0
          %645 = vmatprep.subr.bf16.mxu0 0
          %646 = vmatpush1.bf16.msra.mxu0 0
          %647 = vmatprep.subr.bf16.mxu0 0
          %648 = vmatpush1.bf16.msra.mxu0 0
          %649 = vmatprep.subr.bf16.mxu0 0
          %650 = vmatpush1.bf16.msra.mxu0 0
          %651 = vmatprep.subr.bf16.mxu0 0
          %652 = vmatpush1.bf16.msra.mxu0 0
          %653 = vmatprep.subr.bf16.mxu0 0
          %654 = vmatpush1.bf16.msra.mxu0 0
          %655 = vmatprep.subr.bf16.mxu0 0
          %656 = vmatpush1.bf16.msra.mxu0 0
          %657 = vmatprep.mubr.bf16.mxu0 0
          %658 = vmatmul.mubr.bf16.gmra.mrb[0].mxu0 %v620
          %v659 = vpop.f32.mrb[0].mxu0
          %v660 = vadd.f32 %v592, %v659
          %v661 = vpop.f32.mrb[0].mxu0
          %v662 = vadd.f32 %v592, %v661
          %v663 = vpop.f32.mrb[0].mxu0
          %v664 = vadd.f32 %v597, %v663
          %v665 = vpop.f32.mrb[0].mxu0
          %v666 = vadd.f32 %v597, %v665
          %667 = vmatprep.mubr.bf16.mxu0 0
          %668 = vmatmul.mubr.bf16.gmra.mrb[0].mxu0 %v623
          %v669 = vpop.f32.mrb[0].mxu0
          %v670 = vadd.f32 %v602, %v669
          %v671 = vpop.f32.mrb[0].mxu0
          %v672 = vadd.f32 %v602, %v671
          %v673 = vpop.f32.mrb[0].mxu0
          %v674 = vadd.f32 %v607, %v673
          %v675 = vpop.f32.mrb[0].mxu0
          %v676 = vadd.f32 %v607, %v675
          %677 = vdwg.mxu0
          %v678 = vtanh.pop %v660
          %v679 = vtanh.pop %v662
          %v680 = vtanh.pop %v664
          %v681 = vtanh.pop %v666
          %v682 = vtanh.pop %v670
          %v683 = vtanh.pop %v672
          %v684 = vtanh.pop %v674
          %v685 = vtanh.pop %v676
          %s686 = scalar_lea.vmem %s2, 48
          %v687 = vld [vmem:[%s686] sm:$0xf]
          %v688 = vld [vmem:[%s686 + $0x4] sm:$0xf]
          %v689 = vld [vmem:[%s686 + $0x8] sm:$0xf]
          %v690 = vld [vmem:[%s686 + $0xc] sm:$0xf]
          %v691 = vpack.c.bf16 %v680, %v678
          %v692 = vpack.c.bf16 %v681, %v679
          %v693 = vpack.c.bf16 %v684, %v682
          %v694 = vpack.c.bf16 %v685, %v683
          %s695 = scalar_lea.vmem %s3, 96
          %v696 = vld [vmem:[%s695] sm:$0xff]
          %v697 = vld [vmem:[%s695 + $0x8] sm:$0xff]
          %v698 = vld [vmem:[%s695 + $0x10] sm:$0xff]
          %v699 = vld [vmem:[%s695 + $0x18] sm:$0xff]
          %701 = vset.pattern.permute.xlu0 0
          %702 = vperm.xlu0 %701, %v696
          %v703 = vpop.permute.xlu0 %702
          %706 = vset.pattern.permute.xlu0 0
          %707 = vperm.xlu0 %706, %v697
          %v708 = vpop.permute.xlu0 %707
          %711 = vset.pattern.permute.xlu0 0
          %712 = vperm.xlu0 %711, %v698
          %v713 = vpop.permute.xlu0 %712
          %716 = vset.pattern.permute.xlu0 0
          %717 = vperm.xlu0 %716, %v699
          %v718 = vpop.permute.xlu0 %717
          %v724 = vunpack.c.l.b16 %v687
          %v725 = vunpack.c.l.b16 %v688
          %v726 = vunpack.c.l.b16 %v689
          %v727 = vunpack.c.l.b16 %v690
          %v728 = vpack.c.b16 %v725, %v724
          %v729 = vpack.c.b16 %v727, %v726
          %v731 = vsel %vm388, %v728, 0
          %v734 = vsel %vm388, %v729, 0
          %736 = vmatprep.subr.bf16.mxu0 %v692
          %737 = vmatpush1.bf16.msra.mxu0 %v691
          %738 = vmatprep.subr.bf16.mxu0 %v694
          %739 = vmatpush1.bf16.msra.mxu0 %v693
          %740 = vmatprep.subr.bf16.mxu0 0
          %741 = vmatpush1.bf16.msra.mxu0 0
          %742 = vmatprep.subr.bf16.mxu0 0
          %743 = vmatpush1.bf16.msra.mxu0 0
          %744 = vmatprep.subr.bf16.mxu0 0
          %745 = vmatpush1.bf16.msra.mxu0 0
          %746 = vmatprep.subr.bf16.mxu0 0
          %747 = vmatpush1.bf16.msra.mxu0 0
          %748 = vmatprep.subr.bf16.mxu0 0
          %749 = vmatpush1.bf16.msra.mxu0 0
          %750 = vmatprep.subr.bf16.mxu0 0
          %751 = vmatpush1.bf16.msra.mxu0 0
          %752 = vmatprep.subr.bf16.mxu0 0
          %753 = vmatpush1.bf16.msra.mxu0 0
          %754 = vmatprep.subr.bf16.mxu0 0
          %755 = vmatpush1.bf16.msra.mxu0 0
          %756 = vmatprep.subr.bf16.mxu0 0
          %757 = vmatpush1.bf16.msra.mxu0 0
          %758 = vmatprep.subr.bf16.mxu0 0
          %759 = vmatpush1.bf16.msra.mxu0 0
          %760 = vmatprep.subr.bf16.mxu0 0
          %761 = vmatpush1.bf16.msra.mxu0 0
          %762 = vmatprep.subr.bf16.mxu0 0
          %763 = vmatpush1.bf16.msra.mxu0 0
          %764 = vmatprep.subr.bf16.mxu0 0
          %765 = vmatpush1.bf16.msra.mxu0 0
          %766 = vmatprep.subr.bf16.mxu0 0
          %767 = vmatpush1.bf16.msra.mxu0 0
          %768 = vmatprep.mubr.bf16.mxu0 0
          %769 = vmatmul.mubr.bf16.gmra.mrb[0].mxu0 %v731
          %v770 = vpop.f32.mrb[0].mxu0
          %v771 = vadd.f32 %v703, %v770
          %v772 = vpop.f32.mrb[0].mxu0
          %v773 = vadd.f32 %v703, %v772
          %v774 = vpop.f32.mrb[0].mxu0
          %v775 = vadd.f32 %v708, %v774
          %v776 = vpop.f32.mrb[0].mxu0
          %v777 = vadd.f32 %v708, %v776
          %778 = vmatprep.mubr.bf16.mxu0 0
          %779 = vmatmul.mubr.bf16.gmra.mrb[0].mxu0 %v734
          %v780 = vpop.f32.mrb[0].mxu0
          %v781 = vadd.f32 %v713, %v780
          %v782 = vpop.f32.mrb[0].mxu0
          %v783 = vadd.f32 %v713, %v782
          %v784 = vpop.f32.mrb[0].mxu0
          %v785 = vadd.f32 %v718, %v784
          %v786 = vpop.f32.mrb[0].mxu0
          %v787 = vadd.f32 %v718, %v786
          %788 = vdwg.mxu0
          %v789 = vtanh.pop %v771
          %v790 = vtanh.pop %v773
          %v791 = vtanh.pop %v775
          %v792 = vtanh.pop %v777
          %v793 = vtanh.pop %v781
          %v794 = vtanh.pop %v783
          %v795 = vtanh.pop %v785
          %v796 = vtanh.pop %v787
          %v797 = vadd.f32 %v789, %v567
          %v798 = vadd.f32 %v790, %v568
          %v799 = vadd.f32 %v791, %v569
          %v800 = vadd.f32 %v792, %v570
          %v801 = vadd.f32 %v793, %v571
          %v802 = vadd.f32 %v794, %v572
          %v803 = vadd.f32 %v795, %v573
          %v804 = vadd.f32 %v796, %v574
          %v805 = vpack.c.bf16 %v799, %v797
          %v806 = vpack.c.bf16 %v800, %v798
          %v807 = vpack.c.bf16 %v803, %v801
          %v808 = vpack.c.bf16 %v804, %v802
          %810 = vset.pattern.permute.xlu0 32
          %811 = vperm.xlu0 %810, %v231
          %v812 = vpop.permute.xlu0 %811
          %v814 = vlaneseq
          %v815 = vshrl.u32 %v814, 7
          %v816 = vsub.s32 0, %v815
          %v817 = vrot.slane %v812, %v816
          %v819 = vsel %vm388, %v232, 0
          %821 = vmatprep.subr.bf16.mxu0 %v806
          %822 = vmatpush1.bf16.msra.mxu0 %v805
          %823 = vmatprep.subr.bf16.mxu0 %v808
          %824 = vmatpush1.bf16.msra.mxu0 %v807
          %825 = vmatprep.subr.bf16.mxu0 0
          %826 = vmatpush1.bf16.msra.mxu0 0
          %827 = vmatprep.subr.bf16.mxu0 0
          %828 = vmatpush1.bf16.msra.mxu0 0
          %829 = vmatprep.subr.bf16.mxu0 0
          %830 = vmatpush1.bf16.msra.mxu0 0
          %831 = vmatprep.subr.bf16.mxu0 0
          %832 = vmatpush1.bf16.msra.mxu0 0
          %833 = vmatprep.subr.bf16.mxu0 0
          %834 = vmatpush1.bf16.msra.mxu0 0
          %835 = vmatprep.subr.bf16.mxu0 0
          %836 = vmatpush1.bf16.msra.mxu0 0
          %837 = vmatprep.subr.bf16.mxu0 0
          %838 = vmatpush1.bf16.msra.mxu0 0
          %839 = vmatprep.subr.bf16.mxu0 0
          %840 = vmatpush1.bf16.msra.mxu0 0
          %841 = vmatprep.subr.bf16.mxu0 0
          %842 = vmatpush1.bf16.msra.mxu0 0
          %843 = vmatprep.subr.bf16.mxu0 0
          %844 = vmatpush1.bf16.msra.mxu0 0
          %845 = vmatprep.subr.bf16.mxu0 0
          %846 = vmatpush1.bf16.msra.mxu0 0
          %847 = vmatprep.subr.bf16.mxu0 0
          %848 = vmatpush1.bf16.msra.mxu0 0
          %849 = vmatprep.subr.bf16.mxu0 0
          %850 = vmatpush1.bf16.msra.mxu0 0
          %851 = vmatprep.subr.bf16.mxu0 0
          %852 = vmatpush1.bf16.msra.mxu0 0
          %853 = vmatprep.mubr.bf16.mxu0 0
          %854 = vmatmul.mubr.bf16.gmra.mrb[0].mxu0 %v819
          %v855 = vpop.f32.mrb[0].mxu0
          %v856 = vadd.f32 %v817, %v855
          %v857 = vpop.f32.mrb[0].mxu0
          %v858 = vadd.f32 %v817, %v857
          %v859 = vpop.f32.mrb[0].mxu0
          %v860 = vpop.f32.mrb[0].mxu0
          %861 = vdwg.mxu0
          %v863 = vlaneseq
          %v864 = vshrl.u32 %v863, 7
          %v865 = vsub.s32 0, %v864
          %v866 = vrot.slane %v264, %v865
          %v867 = vlaneseq
          %v868 = vshrl.u32 %v867, 7
          %v869 = vsub.s32 4, %v868
          %v870 = vrot.slane %v264, %v869
          %v873 = vmul.f32 %v856, %v866
          %v874 = vmul.f32 %v858, %v870
          %v877 = vcombine.low %v873, %v874
          %v879 = vunpack.c.l.s4 1966171168
          %v880 = vunpack.c.0.s8 %v879
          %v881 = vlaneseq
          %v882 = vshrl.u32 %v881, 7
          %v883 = vsub.s32 %v880, %v882
          %v884 = vrot.slane %v877, %v883
          %v886 = vunpack.c.l.s4 1966171168
          %v887 = vunpack.c.0.s8 %v886
          %v888 = vlaneseq
          %v889 = vshrl.u32 %v888, 7
          %v890 = vsub.s32 %v887, %v889
          %v891 = vrot.slane %v884, %v890
          %s893 = scalar_lea.vmem %s218, %s240 [#allocation2]
          %v894 = vlaneseq
          %vm895 = vcmp.ge.s32.totalorder %v894, 0
          %vm896 = vcmp.lt.s32.totalorder %v894, 256
          %vm897 = vmand %vm895, %vm896
          %898 = vst.msk [vmem:[%s893] sm:$0x3] %vm897, %v891
        $region45: #{tpu_custom_call.1} parent=39 // loop_footer
          %s238 = sadd.s32 1, %s234
        $region46: #{tpu_custom_call.1} parent=39 // loop_footer_branch
          %233 = sbr.rel target = $region42
        $region47: #{tpu_custom_call.1} parent=39 // loop_exit
          _
        %s899 = sand.u32 %s137, 1
        %s900 = scalar_lea.sflag [#allocation3], %s899
        %s901 = sand.u32 %s137, 1
        %s902 = smul.addr %s901, 4
        %s903 = scalar_lea.vmem [#allocation2], %s902
        // Predicated region
        $region48: #{tpu_custom_call.1} parent=39 // pred_check
          %p904 = pneg %p147
        $region49: #{tpu_custom_call.1} parent=39 // pred_check_branch
          %906 = sbr.rel (%p904) target = $region51
        $region50: #{tpu_custom_call.1} parent=39 // pred_region
          %s907 = smul.u32 4, %s19
          %s909 = ssub.s32 64, 64
          %910 = vsyncadd %s900, %s909
          %s911 = smul.addr %s907, 16
          %s912 = scalar_lea.hbm %s5, %s911
          %s914 = sshll.u32 %s903, 4
          %s915 = int_to_ptr.vmem [resolvable:$true] %s914
          %917 = dma.vmem_to_hbm [thread:$0]  %s915, 64, %s912, %s900
        $region51: #{tpu_custom_call.1} parent=39 // pred_fallthru
          _
      $region40: #{tpu_custom_call.1} parent=5 // pred_fallthru
        _
      %p918 = scmp.le.s32.totalorder 2, %s14
      // Predicated region
      $region52: #{tpu_custom_call.1} parent=5 // pred_check
        %p919 = pneg %p918
      $region53: #{tpu_custom_call.1} parent=5 // pred_check_branch
        %921 = sbr.rel (%p919) target = $region55
      $region54: #{tpu_custom_call.1} parent=5 // pred_region
        %s922 = ssub.s32 %s14, 2
        // Predicated region
        $region56: #{tpu_custom_call.1} parent=54 // pred_check
          %p923 = pneg %p153
        $region57: #{tpu_custom_call.1} parent=54 // pred_check_branch
          %925 = sbr.rel (%p923) target = $region59
        $region58: #{tpu_custom_call.1} parent=54 // pred_region
          %s926 = sand.u32 %s138, 1
          %s927 = scalar_lea.sflag [#allocation3], %s926
          %s928 = sand.u32 %s138, 1
          %s929 = smul.addr %s928, 4
          %s930 = scalar_lea.vmem [#allocation2], %s929
          %931 = dma.done %s927, 64
        $region59: #{tpu_custom_call.1} parent=54 // pred_fallthru
          _
      $region55: #{tpu_custom_call.1} parent=5 // pred_fallthru
        _
    $region6: #{tpu_custom_call.1} parent=1 // loop_footer
      %s18 = sadd.s32 1, %s14
    $region7: #{tpu_custom_call.1} parent=1 // loop_footer_branch
      %13 = sbr.rel target = $region3
    $region8: #{tpu_custom_call.1} parent=1 // loop_exit
      _
    %932 = vsyncpa [#allocation3], 1
    %s933 = scalar_lea.sflag [#allocation3], 1
    %934 = vsyncpa %s933, 1

</llo_original>
